<compile_context>
chip_gen: v5e
topology: v5e:2x2
jax: 0.10.0
libtpu: 0.0.40
codegen_flags: <defaults>
</compile_context>

<pallas_src>
import functools

import jax
import jax.numpy as jnp
from jax import lax
from jax.experimental import pallas as pl
from jax.experimental.pallas import tpu as pltpu

NUM_CLASSES = 21
FEATURE_DIM = 32
BATCH = 4
MARGIN = 5.0


def _tcl_kernel(feat_ref, cent_ref, lab_ref, out_ref, *, margin, batch_size,
                num_classes):
    f = feat_ref[...].astype(jnp.float32)        # (B, D) VMEM
    c = cent_ref[...].astype(jnp.float32)        # (C, D) VMEM

    B = batch_size
    C = num_classes

    # Direct squared pairwise distances on the VPU:
    #   dist[b, k] = sum_d (f[b, d] - c[k, d])^2  (exact, >= 0 by construction)
    diff = f[:, None, :] - c[None, :, :]         # (B, C, D)
    dist = jnp.sum(diff * diff, axis=-1)         # (B, C)

    row_ids = lax.broadcasted_iota(jnp.int32, (1, C), 1)   # (1, C) class ids

    total = jnp.zeros((1, 1), jnp.float32)
    for b in range(B):                           # static unroll, B is tiny
        lab = lab_ref[b]                         # scalar label from SMEM
        is_lab = row_ids == lab                  # (1, C) mask (scalar broadcast)
        d_row = dist[b:b + 1, :]                 # (1, C)
        # pos = ||f_b - centers[lab]||^2 / 2
        pos = jnp.sum(jnp.where(is_lab, d_row, 0.0), axis=1, keepdims=True)
        # neg = min_{k != lab} ||f_b - centers[k]||^2 / 2
        neg = jnp.min(jnp.where(is_lab, jnp.inf, d_row), axis=1, keepdims=True)
        total = total + jnp.maximum(0.5 * (pos - neg) + margin, 0.0)

    out_ref[0] = jnp.sum(total) * (1.0 / batch_size)


def tcl_without_parameters_loss(features, centers, labels, margin=MARGIN):
    """features: (B, D) f32, centers: (C, D) f32, labels: (B,) int -> scalar f32."""
    B, D = features.shape
    C, Dc = centers.shape
    assert D == Dc
    labels_i32 = labels.astype(jnp.int32).reshape(B)

    kernel = functools.partial(
        _tcl_kernel, margin=float(margin), batch_size=B, num_classes=C)

    out = pl.pallas_call(
        kernel,
        out_shape=jax.ShapeDtypeStruct((1,), jnp.float32),
        # gridless call: whole arrays, no software pipeline.
        in_specs=[
            pl.BlockSpec(memory_space=pltpu.MemorySpace.VMEM),   # features
            pl.BlockSpec(memory_space=pltpu.MemorySpace.VMEM),   # centers
            pl.BlockSpec(memory_space=pltpu.MemorySpace.SMEM),   # labels (scalars)
        ],
        out_specs=pl.BlockSpec(memory_space=pltpu.MemorySpace.SMEM),
    )(features, centers, labels_i32)
    return out[0]


def _reference_loss(features, centers, labels, margin=MARGIN):
    # Pure-JAX reference mirroring the PyTorch forward exactly.
    B = features.shape[0]
    C = centers.shape[0]
    total = 0.0
    for b in range(B):
        f = features[b]
        lab = labels[b]
        pos = jnp.sum((f - centers[lab]) ** 2) / 2.0
        d = jnp.sum((f[None, :] - centers) ** 2, axis=1)
        d = jnp.where(jnp.arange(C) == lab, jnp.inf, d)
        neg = jnp.min(d) / 2.0
        total = total + jnp.maximum(pos + margin - neg, 0.0)
    return total / B


if __name__ == "__main__":
    key = jax.random.PRNGKey(0)
    k_feat, k_cent, k_lab = jax.random.split(key, 3)

    # Deterministic synthetic "centers" (replaces torch.load of centers.pth).
    centers = jax.random.normal(k_cent, (NUM_CLASSES, FEATURE_DIM), dtype=jnp.float32)
    features = jax.random.normal(k_feat, (BATCH, FEATURE_DIM), dtype=jnp.float32)
    labels = jax.random.randint(k_lab, (BATCH,), 0, NUM_CLASSES, dtype=jnp.int32)

    loss = tcl_without_parameters_loss(features, centers, labels)
    loss = jax.block_until_ready(loss)

    ref = _reference_loss(features, centers, labels)
    assert jnp.allclose(loss, ref, rtol=1e-5, atol=1e-5), (loss, ref)

    print("KERNEL_OK")
</pallas_src>

<mosaic_0001>
module attributes {stable_mosaic.version = 11 : i64} {
  func.func @_tcl_kernel(%arg0: memref<4x32xf32, #tpu.memory_space<vmem>>, %arg1: memref<21x32xf32, #tpu.memory_space<vmem>>, %arg2: memref<4xi32, #tpu.memory_space<smem>>, %arg3: memref<1xf32, #tpu.memory_space<smem>>) attributes {dimension_semantics = [], scalar_prefetch = 0 : i64, scratch_operands = 0 : i64, tpu.core_type = #tpu.core_type<tc>} {
    %c0 = arith.constant 0 : index
    %c0_0 = arith.constant 0 : index
    %0 = vector.load %arg0[%c0, %c0_0] : memref<4x32xf32, #tpu.memory_space<vmem>>, vector<4x32xf32>
    %c0_1 = arith.constant 0 : index
    %c0_2 = arith.constant 0 : index
    %1 = vector.load %arg1[%c0_1, %c0_2] : memref<21x32xf32, #tpu.memory_space<vmem>>, vector<21x32xf32>
    %2 = vector.shape_cast %0 : vector<4x32xf32> to vector<4x1x32xf32>
    %3 = vector.shape_cast %1 : vector<21x32xf32> to vector<1x21x32xf32>
    %4 = vector.broadcast %2 : vector<4x1x32xf32> to vector<4x21x32xf32>
    %5 = vector.broadcast %3 : vector<1x21x32xf32> to vector<4x21x32xf32>
    %6 = arith.subf %4, %5 : vector<4x21x32xf32>
    %7 = arith.mulf %6, %6 : vector<4x21x32xf32>
    %cst = arith.constant dense<0.000000e+00> : vector<4x21xf32>
    %8 = vector.multi_reduction <add>, %7, %cst [2] : vector<4x21x32xf32> to vector<4x21xf32>
    %9 = tpu.iota {dimensions = array<i32: 1>} : vector<1x21xi32>
    %cst_3 = arith.constant 0.000000e+00 : f32
    %10 = vector.broadcast %cst_3 : f32 to vector<1x1xf32>
    %c0_4 = arith.constant 0 : index
    %11 = memref.load %arg2[%c0_4] : memref<4xi32, #tpu.memory_space<smem>>
    %12 = vector.broadcast %11 : i32 to vector<1x21xi32>
    %13 = arith.cmpi eq, %9, %12 : vector<1x21xi32>
    %14 = vector.extract_strided_slice %8 {offsets = [0, 0], sizes = [1, 21], strides = [1, 1]} : vector<4x21xf32> to vector<1x21xf32>
    %cst_5 = arith.constant 0.000000e+00 : f32
    %15 = vector.broadcast %cst_5 : f32 to vector<1x21xf32>
    %16 = arith.select %13, %14, %15 : vector<1x21xi1>, vector<1x21xf32>
    %cst_6 = arith.constant dense<0.000000e+00> : vector<1xf32>
    %17 = vector.multi_reduction <add>, %16, %cst_6 [1] : vector<1x21xf32> to vector<1xf32>
    %18 = vector.shape_cast %17 : vector<1xf32> to vector<1x1xf32>
    %cst_7 = arith.constant 0x7F800000 : f32
    %19 = vector.broadcast %cst_7 : f32 to vector<1x21xf32>
    %20 = arith.select %13, %19, %14 : vector<1x21xi1>, vector<1x21xf32>
    %cst_8 = arith.constant dense<0x7F800000> : vector<1xf32>
    %21 = vector.multi_reduction <minimumf>, %20, %cst_8 [1] : vector<1x21xf32> to vector<1xf32>
    %22 = vector.shape_cast %21 : vector<1xf32> to vector<1x1xf32>
    %23 = arith.subf %18, %22 : vector<1x1xf32>
    %cst_9 = arith.constant 5.000000e-01 : f32
    %24 = vector.broadcast %cst_9 : f32 to vector<1x1xf32>
    %25 = arith.mulf %24, %23 : vector<1x1xf32>
    %cst_10 = arith.constant 5.000000e+00 : f32
    %26 = vector.broadcast %cst_10 : f32 to vector<1x1xf32>
    %27 = arith.addf %25, %26 : vector<1x1xf32>
    %cst_11 = arith.constant 0.000000e+00 : f32
    %28 = vector.broadcast %cst_11 : f32 to vector<1x1xf32>
    %29 = arith.maximumf %27, %28 : vector<1x1xf32>
    %30 = arith.addf %10, %29 : vector<1x1xf32>
    %c1 = arith.constant 1 : index
    %31 = memref.load %arg2[%c1] : memref<4xi32, #tpu.memory_space<smem>>
    %32 = vector.broadcast %31 : i32 to vector<1x21xi32>
    %33 = arith.cmpi eq, %9, %32 : vector<1x21xi32>
    %34 = vector.extract_strided_slice %8 {offsets = [1, 0], sizes = [1, 21], strides = [1, 1]} : vector<4x21xf32> to vector<1x21xf32>
    %cst_12 = arith.constant 0.000000e+00 : f32
    %35 = vector.broadcast %cst_12 : f32 to vector<1x21xf32>
    %36 = arith.select %33, %34, %35 : vector<1x21xi1>, vector<1x21xf32>
    %cst_13 = arith.constant dense<0.000000e+00> : vector<1xf32>
    %37 = vector.multi_reduction <add>, %36, %cst_13 [1] : vector<1x21xf32> to vector<1xf32>
    %38 = vector.shape_cast %37 : vector<1xf32> to vector<1x1xf32>
    %cst_14 = arith.constant 0x7F800000 : f32
    %39 = vector.broadcast %cst_14 : f32 to vector<1x21xf32>
    %40 = arith.select %33, %39, %34 : vector<1x21xi1>, vector<1x21xf32>
    %cst_15 = arith.constant dense<0x7F800000> : vector<1xf32>
    %41 = vector.multi_reduction <minimumf>, %40, %cst_15 [1] : vector<1x21xf32> to vector<1xf32>
    %42 = vector.shape_cast %41 : vector<1xf32> to vector<1x1xf32>
    %43 = arith.subf %38, %42 : vector<1x1xf32>
    %cst_16 = arith.constant 5.000000e-01 : f32
    %44 = vector.broadcast %cst_16 : f32 to vector<1x1xf32>
    %45 = arith.mulf %44, %43 : vector<1x1xf32>
    %cst_17 = arith.constant 5.000000e+00 : f32
    %46 = vector.broadcast %cst_17 : f32 to vector<1x1xf32>
    %47 = arith.addf %45, %46 : vector<1x1xf32>
    %cst_18 = arith.constant 0.000000e+00 : f32
    %48 = vector.broadcast %cst_18 : f32 to vector<1x1xf32>
    %49 = arith.maximumf %47, %48 : vector<1x1xf32>
    %50 = arith.addf %30, %49 : vector<1x1xf32>
    %c2 = arith.constant 2 : index
    %51 = memref.load %arg2[%c2] : memref<4xi32, #tpu.memory_space<smem>>
    %52 = vector.broadcast %51 : i32 to vector<1x21xi32>
    %53 = arith.cmpi eq, %9, %52 : vector<1x21xi32>
    %54 = vector.extract_strided_slice %8 {offsets = [2, 0], sizes = [1, 21], strides = [1, 1]} : vector<4x21xf32> to vector<1x21xf32>
    %cst_19 = arith.constant 0.000000e+00 : f32
    %55 = vector.broadcast %cst_19 : f32 to vector<1x21xf32>
    %56 = arith.select %53, %54, %55 : vector<1x21xi1>, vector<1x21xf32>
    %cst_20 = arith.constant dense<0.000000e+00> : vector<1xf32>
    %57 = vector.multi_reduction <add>, %56, %cst_20 [1] : vector<1x21xf32> to vector<1xf32>
    %58 = vector.shape_cast %57 : vector<1xf32> to vector<1x1xf32>
    %cst_21 = arith.constant 0x7F800000 : f32
    %59 = vector.broadcast %cst_21 : f32 to vector<1x21xf32>
    %60 = arith.select %53, %59, %54 : vector<1x21xi1>, vector<1x21xf32>
    %cst_22 = arith.constant dense<0x7F800000> : vector<1xf32>
    %61 = vector.multi_reduction <minimumf>, %60, %cst_22 [1] : vector<1x21xf32> to vector<1xf32>
    %62 = vector.shape_cast %61 : vector<1xf32> to vector<1x1xf32>
    %63 = arith.subf %58, %62 : vector<1x1xf32>
    %cst_23 = arith.constant 5.000000e-01 : f32
    %64 = vector.broadcast %cst_23 : f32 to vector<1x1xf32>
    %65 = arith.mulf %64, %63 : vector<1x1xf32>
    %cst_24 = arith.constant 5.000000e+00 : f32
    %66 = vector.broadcast %cst_24 : f32 to vector<1x1xf32>
    %67 = arith.addf %65, %66 : vector<1x1xf32>
    %cst_25 = arith.constant 0.000000e+00 : f32
    %68 = vector.broadcast %cst_25 : f32 to vector<1x1xf32>
    %69 = arith.maximumf %67, %68 : vector<1x1xf32>
    %70 = arith.addf %50, %69 : vector<1x1xf32>
    %c3 = arith.constant 3 : index
    %71 = memref.load %arg2[%c3] : memref<4xi32, #tpu.memory_space<smem>>
    %72 = vector.broadcast %71 : i32 to vector<1x21xi32>
    %73 = arith.cmpi eq, %9, %72 : vector<1x21xi32>
    %74 = vector.extract_strided_slice %8 {offsets = [3, 0], sizes = [1, 21], strides = [1, 1]} : vector<4x21xf32> to vector<1x21xf32>
    %cst_26 = arith.constant 0.000000e+00 : f32
    %75 = vector.broadcast %cst_26 : f32 to vector<1x21xf32>
    %76 = arith.select %73, %74, %75 : vector<1x21xi1>, vector<1x21xf32>
    %cst_27 = arith.constant dense<0.000000e+00> : vector<1xf32>
    %77 = vector.multi_reduction <add>, %76, %cst_27 [1] : vector<1x21xf32> to vector<1xf32>
    %78 = vector.shape_cast %77 : vector<1xf32> to vector<1x1xf32>
    %cst_28 = arith.constant 0x7F800000 : f32
    %79 = vector.broadcast %cst_28 : f32 to vector<1x21xf32>
    %80 = arith.select %73, %79, %74 : vector<1x21xi1>, vector<1x21xf32>
    %cst_29 = arith.constant dense<0x7F800000> : vector<1xf32>
    %81 = vector.multi_reduction <minimumf>, %80, %cst_29 [1] : vector<1x21xf32> to vector<1xf32>
    %82 = vector.shape_cast %81 : vector<1xf32> to vector<1x1xf32>
    %83 = arith.subf %78, %82 : vector<1x1xf32>
    %cst_30 = arith.constant 5.000000e-01 : f32
    %84 = vector.broadcast %cst_30 : f32 to vector<1x1xf32>
    %85 = arith.mulf %84, %83 : vector<1x1xf32>
    %cst_31 = arith.constant 5.000000e+00 : f32
    %86 = vector.broadcast %cst_31 : f32 to vector<1x1xf32>
    %87 = arith.addf %85, %86 : vector<1x1xf32>
    %cst_32 = arith.constant 0.000000e+00 : f32
    %88 = vector.broadcast %cst_32 : f32 to vector<1x1xf32>
    %89 = arith.maximumf %87, %88 : vector<1x1xf32>
    %90 = arith.addf %70, %89 : vector<1x1xf32>
    %91 = vector.shape_cast %90 : vector<1x1xf32> to vector<1x1x1xf32>
    %cst_33 = arith.constant dense<0.000000e+00> : vector<1xf32>
    %92 = vector.multi_reduction <add>, %91, %cst_33 [1, 2] : vector<1x1x1xf32> to vector<1xf32>
    %93 = vector.shape_cast %92 : vector<1xf32> to vector<1x1x1xf32>
    %94 = vector.extract %93[0, 0, 0] : f32 from vector<1x1x1xf32>
    %cst_34 = arith.constant 2.500000e-01 : f32
    %95 = arith.mulf %94, %cst_34 : f32
    %c0_35 = arith.constant 0 : index
    %96 = memref.load %arg3[%c0_35] : memref<1xf32, #tpu.memory_space<smem>>
    memref.store %95, %arg3[%c0_35] : memref<1xf32, #tpu.memory_space<smem>>
    return
  }
}

</mosaic_0001>

<llo_original>
// kernel: tpu_custom_call.1
$region0: #{tpu_custom_call.1}
  #allocation0 [shape = 'u32[]', space=smem, size = 0x4, offset = 0x4, fixed_abs, tag = 'smem constant byte address 0x4 - core index']
  #allocation1 [shape = 'u32[72,128]{1,0:T(1,128)}', space=vmem, size = 0x9000, scoped, tag = 'internal scratch']
  %s0 = inlined_call_operand.hbm [shape: f32[4,32], index: 0, kind: input, shape index: {}]
  %s1 = inlined_call_operand.hbm [shape: f32[21,32], index: 1, kind: input, shape index: {}]
  %s2 = inlined_call_operand.vmem [shape: s32[4], index: 2, kind: input, shape index: {}]
  %s3 = inlined_call_operand.hbm [shape: f32[1], index: 3, kind: output, shape index: {}]
  %s4 = sld [smem:[#allocation0]]
  $region34: #{tpu_custom_call.1} parent=0
    _
  %s6 = ssub.s32 1, %s4
  %s7 = scalar_select 0, %s6, %s4
  $region1: #{tpu_custom_call.1} parent=0
    #allocation2 [shape = 'u8[2048]{0}', space=vmem, size = 0x800, scoped, tag = 'input window, operand 0, single buffered']
    #allocation3 [shape = 's32[1]{0}', space=sflag, size = 0x4, scoped, tag = 'scoped memory for tpu_custom_call.1']
    #allocation4 [shape = 's32[1]{0}', space=sflag, size = 0x4, scoped, tag = 'scoped memory for tpu_custom_call.1']
    #allocation5 [shape = 's32[1]{0}', space=sflag, size = 0x4, scoped, tag = 'scoped memory for tpu_custom_call.1']
    #allocation6 [shape = 'u8[12288]{0}', space=vmem, size = 0x3000, scoped, tag = 'input window, operand 1, single buffered']
    #allocation7 [shape = 's32[1]{0}', space=sflag, size = 0x4, scoped, tag = 'scoped memory for tpu_custom_call.1']
    #allocation8 [shape = 'u8[512]{0}', space=smem, size = 0x200, scoped, tag = 'input window, operand 2, single buffered']
    #allocation9 [shape = 'u8[512]{0}', space=smem, size = 0x200, scoped, tag = 'output window, operand 0, single buffered']
    %8 = vsyncpa [#allocation3], 0
    %9 = vsyncpa [#allocation7], 0
    %10 = vsyncpa [#allocation5], 0
    %11 = vsyncpa [#allocation4], 0
    // Predicated region
    $region2: #{tpu_custom_call.1} parent=1 // pred_check
      _
    $region3: #{tpu_custom_call.1} parent=1 // pred_check_branch
      %13 = sbr.rel (0) target = $region5
    $region4: #{tpu_custom_call.1} parent=1 // pred_region
      %15 = vsyncadd [#allocation3], 0
      %s17 = sshll.u32 %s0, 4
      %s18 = int_to_ptr.hbm [resolvable:$true] %s17
      %s19 = sshll.u32 [#allocation2], 4
      %s20 = int_to_ptr.vmem [resolvable:$true] %s19
      %22 = dma.hbm_to_vmem [thread:$0]  %s18, 64, %s20, [#allocation3]
    $region5: #{tpu_custom_call.1} parent=1 // pred_fallthru
      _
    // Predicated region
    $region6: #{tpu_custom_call.1} parent=1 // pred_check
      _
    $region7: #{tpu_custom_call.1} parent=1 // pred_check_branch
      %24 = sbr.rel (0) target = $region9
    $region8: #{tpu_custom_call.1} parent=1 // pred_region
      %26 = vsyncadd [#allocation7], 0
      %s27 = sshll.u32 %s1, 4
      %s28 = int_to_ptr.hbm [resolvable:$true] %s27
      %s29 = sshll.u32 [#allocation6], 4
      %s30 = int_to_ptr.vmem [resolvable:$true] %s29
      %35 = dma.hbm_to_vmem [thread:$0]  %s28, 384, %s30, [#allocation7], 128, 128, 8
    $region9: #{tpu_custom_call.1} parent=1 // pred_fallthru
      _
    // Predicated region
    $region10: #{tpu_custom_call.1} parent=1 // pred_check
      _
    $region11: #{tpu_custom_call.1} parent=1 // pred_check_branch
      %37 = sbr.rel (0) target = $region13
    $region12: #{tpu_custom_call.1} parent=1 // pred_region
      %39 = vsyncadd [#allocation5], 0
      %s41 = sshll.u32 %s2, 4
      %s42 = int_to_ptr.vmem [resolvable:$true] %s41
      %44 = dma.vmem_to_smem %s42, 16, [#allocation8], [#allocation5]
    $region13: #{tpu_custom_call.1} parent=1 // pred_fallthru
      _
    // Predicated region
    $region14: #{tpu_custom_call.1} parent=1 // pred_check
      _
    $region15: #{tpu_custom_call.1} parent=1 // pred_check_branch
      %46 = sbr.rel (0) target = $region17
    $region16: #{tpu_custom_call.1} parent=1 // pred_region
      %48 = dma.done [#allocation3], 64
    $region17: #{tpu_custom_call.1} parent=1 // pred_fallthru
      _
    // Predicated region
    $region18: #{tpu_custom_call.1} parent=1 // pred_check
      _
    $region19: #{tpu_custom_call.1} parent=1 // pred_check_branch
      %50 = sbr.rel (0) target = $region21
    $region20: #{tpu_custom_call.1} parent=1 // pred_region
      %52 = dma.done [#allocation7], 384
    $region21: #{tpu_custom_call.1} parent=1 // pred_fallthru
      _
    // Predicated region
    $region22: #{tpu_custom_call.1} parent=1 // pred_check
      _
    $region23: #{tpu_custom_call.1} parent=1 // pred_check_branch
      %54 = sbr.rel (0) target = $region25
    $region24: #{tpu_custom_call.1} parent=1 // pred_region
      %56 = dma.done [#allocation5], 16
    $region25: #{tpu_custom_call.1} parent=1 // pred_fallthru
      _
    %57 = sfence
    %v58 = vld [vmem:[#allocation2] sm:$0xf]
    %v59 = vld [vmem:[#allocation6] sm:$0xff]
    %v60 = vld [vmem:[#allocation6 + $0x8] sm:$0xff]
    %v61 = vld [vmem:[#allocation6 + $0x10] sm:$0x1f]
    %v63 = vrot.slane %v58, 1
    %v64 = vrot.slane %v58, 2
    %v65 = vrot.slane %v58, 3
    %v66 = vperm.slane %v58, 0
    %v67 = vperm.slane %v63, 0
    %v68 = vperm.slane %v64, 0
    %v69 = vperm.slane %v65, 0
    %v74 = vsub.f32 %v66, %v59
    %v75 = vsub.f32 %v66, %v60
    %v76 = vsub.f32 %v66, %v61
    %v77 = vsub.f32 %v67, %v59
    %v78 = vsub.f32 %v67, %v60
    %v79 = vsub.f32 %v67, %v61
    %v80 = vsub.f32 %v68, %v59
    %v81 = vsub.f32 %v68, %v60
    %v82 = vsub.f32 %v68, %v61
    %v83 = vsub.f32 %v69, %v59
    %v84 = vsub.f32 %v69, %v60
    %v85 = vsub.f32 %v69, %v61
    %v86 = vmul.f32 %v74, %v74
    %v87 = vmul.f32 %v75, %v75
    %v88 = vmul.f32 %v76, %v76
    %v89 = vmul.f32 %v77, %v77
    %v90 = vmul.f32 %v78, %v78
    %v91 = vmul.f32 %v79, %v79
    %v92 = vmul.f32 %v80, %v80
    %v93 = vmul.f32 %v81, %v81
    %v94 = vmul.f32 %v82, %v82
    %v95 = vmul.f32 %v83, %v83
    %v96 = vmul.f32 %v84, %v84
    %v97 = vmul.f32 %v85, %v85
    %vm98 = vcmask 261120
    %v99 = vsel %vm98, %v86, 0.0
    %100 = vadd.xlane.f32.xlu0 %v99
    %v101 = vpop.xlane.xlu0 %100
    %v102 = vsel %vm98, %v87, 0.0
    %103 = vadd.xlane.f32.xlu0 %v102
    %v104 = vpop.xlane.xlu0 %103
    %vm105 = vcmask 258048
    %v106 = vsel %vm105, %v88, 0.0
    %107 = vadd.xlane.f32.xlu0 %v106
    %v108 = vpop.xlane.xlu0 %107
    %v109 = vsel %vm98, %v89, 0.0
    %110 = vadd.xlane.f32.xlu0 %v109
    %v111 = vpop.xlane.xlu0 %110
    %v112 = vsel %vm98, %v90, 0.0
    %113 = vadd.xlane.f32.xlu0 %v112
    %v114 = vpop.xlane.xlu0 %113
    %v115 = vsel %vm105, %v91, 0.0
    %116 = vadd.xlane.f32.xlu0 %v115
    %v117 = vpop.xlane.xlu0 %116
    %v118 = vsel %vm98, %v92, 0.0
    %119 = vadd.xlane.f32.xlu0 %v118
    %v120 = vpop.xlane.xlu0 %119
    %v121 = vsel %vm98, %v93, 0.0
    %122 = vadd.xlane.f32.xlu0 %v121
    %v123 = vpop.xlane.xlu0 %122
    %v124 = vsel %vm105, %v94, 0.0
    %125 = vadd.xlane.f32.xlu0 %v124
    %v126 = vpop.xlane.xlu0 %125
    %v127 = vsel %vm98, %v95, 0.0
    %128 = vadd.xlane.f32.xlu0 %v127
    %v129 = vpop.xlane.xlu0 %128
    %v130 = vsel %vm98, %v96, 0.0
    %131 = vadd.xlane.f32.xlu0 %v130
    %v132 = vpop.xlane.xlu0 %131
    %v133 = vsel %vm105, %v97, 0.0
    %134 = vadd.xlane.f32.xlu0 %v133
    %v135 = vpop.xlane.xlu0 %134
    %v136 = vlaneseq
    %v137 = vand.u32 %v136, 127
    %s138 = sld [smem:[#allocation8]]
    %v139 = vstv %s138
    %vm140 = vcmp.eq.s32.totalorder %v137, %v139
    %v144 = vperm.slane %v101, %v137
    %v145 = vadd.s32 %v137, 4294967288
    %v146 = vperm.slane %v104, %v145
    %vm147 = vcmask 130112
    %v148 = vsel %vm147, %v146, %v144
    %v149 = vadd.s32 %v137, 4294967280
    %v150 = vperm.slane %v108, %v149
    %vm151 = vcmask 195712
    %v152 = vsel %vm151, %v150, %v148
    %v154 = vsel %vm140, %v152, 0.0
    %vm155 = vcmask 163840
    %v156 = vsel %vm155, %v154, 0.0
    %157 = vadd.xlane.f32.xlu0 %v156
    %v158 = vpop.xlane.xlu0 %157
    %v159 = vsel %vm140, inf, %v152
    %v160 = vsel %vm155, %v159, inf
    %161 = vmin.xlane.f32.xlu0 %v160
    %v162 = vpop.xlane.xlu0 %161
    %v163 = vsub.f32 %v158, %v162
    %v164 = vmul.f32 %v163, 0.5
    %v165 = vadd.f32 %v164, 5.0
    %v166 = vmax.f32 %v165, 0.0
    %v167 = vadd.f32 %v166, 0.0
    %s168 = sld [smem:[#allocation8 + $0x1]]
    %v169 = vstv %s168
    %vm170 = vcmp.eq.s32.totalorder %v137, %v169
    %v174 = vperm.slane %v111, %v137
    %v175 = vperm.slane %v114, %v145
    %v176 = vsel %vm147, %v175, %v174
    %v177 = vperm.slane %v117, %v149
    %v178 = vsel %vm151, %v177, %v176
    %v180 = vsel %vm170, %v178, 0.0
    %v181 = vsel %vm155, %v180, 0.0
    %182 = vadd.xlane.f32.xlu0 %v181
    %v183 = vpop.xlane.xlu0 %182
    %v184 = vsel %vm170, inf, %v178
    %v185 = vsel %vm155, %v184, inf
    %186 = vmin.xlane.f32.xlu0 %v185
    %v187 = vpop.xlane.xlu0 %186
    %v188 = vsub.f32 %v183, %v187
    %v189 = vmul.f32 %v188, 0.5
    %v190 = vadd.f32 %v189, 5.0
    %v191 = vmax.f32 %v190, 0.0
    %v192 = vadd.f32 %v167, %v191
    %s193 = sld [smem:[#allocation8 + $0x2]]
    %v194 = vstv %s193
    %vm195 = vcmp.eq.s32.totalorder %v137, %v194
    %v199 = vperm.slane %v120, %v137
    %v200 = vperm.slane %v123, %v145
    %v201 = vsel %vm147, %v200, %v199
    %v202 = vperm.slane %v126, %v149
    %v203 = vsel %vm151, %v202, %v201
    %v205 = vsel %vm195, %v203, 0.0
    %v206 = vsel %vm155, %v205, 0.0
    %207 = vadd.xlane.f32.xlu0 %v206
    %v208 = vpop.xlane.xlu0 %207
    %v209 = vsel %vm195, inf, %v203
    %v210 = vsel %vm155, %v209, inf
    %211 = vmin.xlane.f32.xlu0 %v210
    %v212 = vpop.xlane.xlu0 %211
    %v213 = vsub.f32 %v208, %v212
    %v214 = vmul.f32 %v213, 0.5
    %v215 = vadd.f32 %v214, 5.0
    %v216 = vmax.f32 %v215, 0.0
    %v217 = vadd.f32 %v192, %v216
    %s218 = sld [smem:[#allocation8 + $0x3]]
    %v219 = vstv %s218
    %vm220 = vcmp.eq.s32.totalorder %v137, %v219
    %v224 = vperm.slane %v129, %v137
    %v225 = vperm.slane %v132, %v145
    %v226 = vsel %vm147, %v225, %v224
    %v227 = vperm.slane %v135, %v149
    %v228 = vsel %vm151, %v227, %v226
    %v230 = vsel %vm220, %v228, 0.0
    %v231 = vsel %vm155, %v230, 0.0
    %232 = vadd.xlane.f32.xlu0 %v231
    %v233 = vpop.xlane.xlu0 %232
    %v234 = vsel %vm220, inf, %v228
    %v235 = vsel %vm155, %v234, inf
    %236 = vmin.xlane.f32.xlu0 %v235
    %v237 = vpop.xlane.xlu0 %236
    %v238 = vsub.f32 %v233, %v237
    %v239 = vmul.f32 %v238, 0.5
    %v240 = vadd.f32 %v239, 5.0
    %v241 = vmax.f32 %v240, 0.0
    %v242 = vadd.f32 %v217, %v241
    %v243 = vadd.f32 %v242, 0.0
    %s244 = vtos %v243
    %s245 = smul.f32 %s244, 0.25
    %s246 = scalar_lea.smem [#allocation9], 0
    %247 = sst [smem:[%s246]] %s245
    // Predicated region
    $region26: #{tpu_custom_call.1} parent=1 // pred_check
      _
    $region27: #{tpu_custom_call.1} parent=1 // pred_check_branch
      %249 = sbr.rel (0) target = $region29
    $region28: #{tpu_custom_call.1} parent=1 // pred_region
      %251 = vsyncadd [#allocation4], 0
      %s253 = sshll.u32 %s3, 4
      %s254 = int_to_ptr.hbm [resolvable:$true] %s253
      %256 = dma.smem_to_hbm [#allocation9], 16, %s254, [#allocation4]
    $region29: #{tpu_custom_call.1} parent=1 // pred_fallthru
      _
    // Predicated region
    $region30: #{tpu_custom_call.1} parent=1 // pred_check
      _
    $region31: #{tpu_custom_call.1} parent=1 // pred_check_branch
      %258 = sbr.rel (0) target = $region33
    $region32: #{tpu_custom_call.1} parent=1 // pred_region
      %260 = dma.done [#allocation4], 16
    $region33: #{tpu_custom_call.1} parent=1 // pred_fallthru
      _
    %261 = sfence
    %262 = vsyncpa [#allocation3], 1
    %263 = vsyncpa [#allocation7], 1
    %264 = vsyncpa [#allocation4], 1
    %265 = vsyncpa [#allocation5], 1

</llo_original>
